<compile_context>
chip_gen: v6e
topology: v6e:2x2x1
jax: 0.10.0
libtpu: 0.0.40
codegen_flags: <defaults>
</compile_context>

<pallas_src>
import jax
import jax.numpy as jnp
from jax.experimental import pallas as pl
from jax.experimental.pallas import tpu as pltpu


# ---------------------------------------------------------------------------
# kernel
# ---------------------------------------------------------------------------
def _vilid_loss_kernel(
    # SMEM scalar inputs
    nv_ref,        # (1,)  int32  : number of valid batch elements
    sc_ref,        # (3,)  float32: [gamma, wd_scaled, float(n)]
    # VMEM gridded inputs, (row_block, 128) f32 tiles
    logits_ref,
    labels_ref,
    sinc_ref,
    sr_ref,
    # VMEM output
    out_ref,       # (1, 128) f32 : lanes 0..3 = total, bce, align, wd
    # VMEM scratch accumulators (persist across grid steps)
    bce_acc,       # (1, 128) f32 lane-partial sums
    si_acc,
    sr_acc,
    cnt_acc,
):
    i = pl.program_id(0)
    nsteps = pl.num_programs(0)

    @pl.when(i == 0)
    def _init():
        bce_acc[...] = jnp.zeros_like(bce_acc)
        si_acc[...] = jnp.zeros_like(si_acc)
        sr_acc[...] = jnp.zeros_like(sr_acc)
        cnt_acc[...] = jnp.zeros_like(cnt_acc)

    x = logits_ref[...]                       # (rb, 128) f32
    y = labels_ref[...]
    si = sinc_ref[...]
    sr = sr_ref[...]

    rb = x.shape[0]
    # global flat element index of every (row, lane) position in this block
    row = jax.lax.broadcasted_iota(jnp.int32, (rb, 128), 0) + i * rb
    lane = jax.lax.broadcasted_iota(jnp.int32, (rb, 128), 1)
    flat = row * 128 + lane
    valid = flat < nv_ref[0]                  # excludes padding / partial blocks

    # numerically stable BCE-with-logits (matches torch BCEWithLogitsLoss):
    #   l_i = max(x, 0) - x*y + log(1 + exp(-|x|))
    bce_elem = jnp.maximum(x, 0.0) - x * y + jnp.log(1.0 + jnp.exp(-jnp.abs(x)))
    neg = jnp.logical_and(valid, y == 0.0)    # negatives (labels == 0)

    # lane-partial sums (sublane reduce only; final lane reduce happens once)
    bce_acc[...] += jnp.sum(jnp.where(valid, bce_elem, 0.0), axis=0, keepdims=True)
    cnt_acc[...] += jnp.sum(jnp.where(neg, 1.0, 0.0), axis=0, keepdims=True)
    si_acc[...] += jnp.sum(jnp.where(neg, si, 0.0), axis=0, keepdims=True)
    sr_acc[...] += jnp.sum(jnp.where(neg, sr, 0.0), axis=0, keepdims=True)

    @pl.when(i == nsteps - 1)
    def _finalize():
        gamma = sc_ref[0]
        wd = sc_ref[1]
        n_f = sc_ref[2]

        bce = jnp.sum(bce_acc[...], keepdims=True) / n_f            # (1, 1)
        cnt = jnp.sum(cnt_acc[...], keepdims=True)
        sum_si = jnp.sum(si_acc[...], keepdims=True)
        sum_sr = jnp.sum(sr_acc[...], keepdims=True)
        safe_cnt = jnp.maximum(cnt, 1.0)
        # gamma * (mean(S_inc[neg]) + mean(S_r[neg])); exactly 0 with no negatives
        align = jnp.where(cnt > 0.0, gamma * (sum_si + sum_sr) / safe_cnt, 0.0)
        total = bce + align + wd

        out_lane = jax.lax.broadcasted_iota(jnp.int32, (1, 128), 1)
        packed = jnp.where(out_lane == 0, total,
                 jnp.where(out_lane == 1, bce,
                 jnp.where(out_lane == 2, align,
                 jnp.where(out_lane == 3, wd, 0.0))))
        out_ref[...] = packed


# ---------------------------------------------------------------------------
# wrapper
# ---------------------------------------------------------------------------
def _round_up(n, m):
    return ((n + m - 1) // m) * m


def vilid_loss(logits, labels, S_inc, S_r, params=None, *,
               gamma=0.1, weight_decay=0.0, block_rows=512):
    """JAX/Pallas equivalent of ViLIDLoss.forward. Returns dict of f32 scalars."""
    logits = jnp.asarray(logits, jnp.float32).reshape(-1)
    n = logits.shape[0]
    if n == 0:
        # torch BCEWithLogitsLoss on an empty batch returns NaN; we refuse instead.
        raise ValueError("vilid_loss requires at least one batch element")

    # sublane-dense (rows, 128) layout; pad only to the next multiple of 8*128
    npad = _round_up(n, 8 * 128)
    rows = npad // 128

    def tiles(v):
        v = jnp.asarray(v, jnp.float32).reshape(-1)
        return jnp.pad(v, (0, npad - n)).reshape(rows, 128)

    lg, lb, si, sr = tiles(logits), tiles(labels), tiles(S_inc), tiles(S_r)

    # row-block size: multiple of 8, capped so small batches stay single-block
    rb = max(8, min(_round_up(block_rows, 8), rows))
    grid = (pl.cdiv(rows, rb),)

    # ---- weight decay: fused per-param sum-of-squares (no concat/pad copy,
    #      no second pallas_call); scaled once and passed to the kernel in SMEM.
    if params is not None and len(params) > 0 and weight_decay > 0.0:
        wd_scaled = jnp.float32(weight_decay) * sum(
            jnp.sum(jnp.square(jnp.asarray(p, jnp.float32))) for p in params
        )
    else:
        wd_scaled = jnp.float32(0.0)

    nv = jnp.array([n], jnp.int32)
    sc = jnp.stack([jnp.asarray(gamma, jnp.float32),
                    jnp.asarray(wd_scaled, jnp.float32),
                    jnp.asarray(n, jnp.float32)])

    packed = pl.pallas_call(
        _vilid_loss_kernel,
        out_shape=jax.ShapeDtypeStruct((1, 128), jnp.float32),
        grid=grid,
        in_specs=[
            pl.BlockSpec(memory_space=pltpu.MemorySpace.SMEM),   # nv
            pl.BlockSpec(memory_space=pltpu.MemorySpace.SMEM),   # sc
            pl.BlockSpec((rb, 128), lambda i: (i, 0)),           # logits
            pl.BlockSpec((rb, 128), lambda i: (i, 0)),           # labels
            pl.BlockSpec((rb, 128), lambda i: (i, 0)),           # S_inc
            pl.BlockSpec((rb, 128), lambda i: (i, 0)),           # S_r
        ],
        out_specs=pl.BlockSpec((1, 128), lambda i: (0, 0)),
        scratch_shapes=[pltpu.VMEM((1, 128), jnp.float32)] * 4,
        compiler_params=pltpu.CompilerParams(
            dimension_semantics=("arbitrary",)),   # reduction axis carries accumulators
    )(nv, sc, lg, lb, si, sr)

    vec = packed[0]
    return {"total": vec[0], "bce": vec[1], "align": vec[2], "wd": vec[3]}


# ---------------------------------------------------------------------------
# pure-JAX reference (same math, no Pallas)
# ---------------------------------------------------------------------------
def reference(logits, labels, S_inc, S_r, params=None, *,
              gamma=0.1, weight_decay=0.0):
    x = jnp.asarray(logits, jnp.float32).reshape(-1)
    y = jnp.asarray(labels, jnp.float32).reshape(-1)
    bce = jnp.mean(jnp.maximum(x, 0.0) - x * y + jnp.log1p(jnp.exp(-jnp.abs(x))))
    mask = y == 0.0
    cnt = jnp.sum(mask.astype(jnp.float32))
    safe = jnp.maximum(cnt, 1.0)
    align = jnp.where(
        cnt > 0.0,
        gamma * (jnp.sum(jnp.where(mask, jnp.asarray(S_inc, jnp.float32).reshape(-1), 0.0)) / safe
                 + jnp.sum(jnp.where(mask, jnp.asarray(S_r, jnp.float32).reshape(-1), 0.0)) / safe),
        0.0,
    )
    wd = jnp.float32(0.0)
    if params is not None and len(params) > 0 and weight_decay > 0.0:
        wd = jnp.float32(weight_decay) * sum(
            jnp.sum(jnp.square(jnp.asarray(p, jnp.float32))) for p in params
        )
    total = bce + align + wd
    return {"total": total, "bce": bce, "align": align, "wd": wd}


def _check(out, ref, tag, tol=1e-5):
    for k in ("total", "bce", "align", "wd"):
        a, b = float(out[k]), float(ref[k])
        assert abs(a - b) <= tol * max(1.0, abs(b)), (tag, k, a, b)


# ---------------------------------------------------------------------------
if __name__ == "__main__":
    key = jax.random.PRNGKey(0)
    k1, k2, k3, k4, k5, k6, k7 = jax.random.split(key, 7)

    # ---- small case (B = 8), matches typical loss usage ----
    B = 8
    logits = jax.random.normal(k1, (B,), jnp.float32)
    labels = jnp.array([1, 0, 1, 0, 0, 1, 1, 0], jnp.float32)   # mixed pos/neg
    S_inc = jax.random.normal(k2, (B,), jnp.float32)
    S_r = jax.random.normal(k3, (B,), jnp.float32)
    params = [
        jax.random.normal(k4, (16, 32), jnp.float32) * 0.1,
        jax.random.normal(k5, (32,), jnp.float32) * 0.1,
    ]

    # case 1: defaults (gamma=0.1, weight_decay=0, no params)
    out1 = vilid_loss(logits, labels, S_inc, S_r)
    jax.block_until_ready(out1["total"])
    _check(out1, reference(logits, labels, S_inc, S_r), "default")

    # case 2: with weight decay over a parameter list
    out2 = vilid_loss(logits, labels, S_inc, S_r, params,
                      gamma=0.1, weight_decay=0.01)
    jax.block_until_ready(out2["total"])
    _check(out2, reference(logits, labels, S_inc, S_r, params,
                           gamma=0.1, weight_decay=0.01), "weight_decay")

    # case 3: no negative labels -> align must be exactly 0
    ones = jnp.ones((B,), jnp.float32)
    out3 = vilid_loss(logits, ones, S_inc, S_r)
    jax.block_until_ready(out3["total"])
    assert float(out3["align"]) == 0.0
    _check(out3, reference(logits, ones, S_inc, S_r), "all_positive")

    # case 4: larger batch with a small row-block to exercise the multi-step
    # pipelined grid + cross-step accumulators (3 grid steps here).
    N = 3000
    lg = jax.random.normal(k6, (N,), jnp.float32)
    lb = (jax.random.uniform(k7, (N,)) > 0.5).astype(jnp.float32)
    si = jax.random.normal(jax.random.PRNGKey(1), (N,), jnp.float32)
    sr = jax.random.normal(jax.random.PRNGKey(2), (N,), jnp.float32)
    out4 = vilid_loss(lg, lb, si, sr, gamma=0.3, block_rows=8)
    jax.block_until_ready(out4["total"])
    _check(out4, reference(lg, lb, si, sr, gamma=0.3), "grid", tol=1e-4)

    print("KERNEL_OK")
</pallas_src>

<mosaic_0001>
module attributes {stable_mosaic.version = 11 : i64} {
  func.func @_vilid_loss_kernel(%arg0: i32, %arg1: memref<1xi32, #tpu.memory_space<smem>>, %arg2: memref<3xf32, #tpu.memory_space<smem>>, %arg3: memref<8x128xf32, #tpu.memory_space<vmem>>, %arg4: memref<8x128xf32, #tpu.memory_space<vmem>>, %arg5: memref<8x128xf32, #tpu.memory_space<vmem>>, %arg6: memref<8x128xf32, #tpu.memory_space<vmem>>, %arg7: memref<1x128xf32, #tpu.memory_space<vmem>>, %arg8: memref<1x128xf32, #tpu.memory_space<vmem>>, %arg9: memref<1x128xf32, #tpu.memory_space<vmem>>, %arg10: memref<1x128xf32, #tpu.memory_space<vmem>>, %arg11: memref<1x128xf32, #tpu.memory_space<vmem>>) attributes {dimension_semantics = [#tpu.dimension_semantics<arbitrary>], iteration_bounds = array<i64: 1>, scalar_prefetch = 0 : i64, scratch_operands = 4 : i64, tpu.core_type = #tpu.core_type<tc>, window_params = [{transform_indices = @transform_0, window_bounds = array<i64: 1>}, {transform_indices = @transform_1, window_bounds = array<i64: 3>}, {transform_indices = @transform_2, window_bounds = array<i64: 8, 128>}, {transform_indices = @transform_3, window_bounds = array<i64: 8, 128>}, {transform_indices = @transform_4, window_bounds = array<i64: 8, 128>}, {transform_indices = @transform_5, window_bounds = array<i64: 8, 128>}, {pipeline_mode = #tpu.pipeline_mode<synchronous>, transform_indices = @transform_6, window_bounds = array<i64: 1, 128>}]} {
    %c0_i32 = arith.constant 0 : i32
    %0 = arith.cmpi eq, %arg0, %c0_i32 : i32
    %1 = arith.extui %0 : i1 to i32
    %c0_i32_0 = arith.constant 0 : i32
    %2 = arith.cmpi ne, %1, %c0_i32_0 : i32
    scf.if %2 {
      %cst_39 = arith.constant 0.000000e+00 : f32
      %65 = vector.broadcast %cst_39 : f32 to vector<1x128xf32>
      %c0_40 = arith.constant 0 : index
      %c0_41 = arith.constant 0 : index
      %66 = vector.load %arg8[%c0_40, %c0_41] : memref<1x128xf32, #tpu.memory_space<vmem>>, vector<1x128xf32>
      tpu.vector_store %arg8[%c0_40, %c0_41], %65 {strides = array<i32>} : memref<1x128xf32, #tpu.memory_space<vmem>>, vector<1x128xf32>,
      %cst_42 = arith.constant 0.000000e+00 : f32
      %67 = vector.broadcast %cst_42 : f32 to vector<1x128xf32>
      %c0_43 = arith.constant 0 : index
      %c0_44 = arith.constant 0 : index
      %68 = vector.load %arg9[%c0_43, %c0_44] : memref<1x128xf32, #tpu.memory_space<vmem>>, vector<1x128xf32>
      tpu.vector_store %arg9[%c0_43, %c0_44], %67 {strides = array<i32>} : memref<1x128xf32, #tpu.memory_space<vmem>>, vector<1x128xf32>,
      %cst_45 = arith.constant 0.000000e+00 : f32
      %69 = vector.broadcast %cst_45 : f32 to vector<1x128xf32>
      %c0_46 = arith.constant 0 : index
      %c0_47 = arith.constant 0 : index
      %70 = vector.load %arg10[%c0_46, %c0_47] : memref<1x128xf32, #tpu.memory_space<vmem>>, vector<1x128xf32>
      tpu.vector_store %arg10[%c0_46, %c0_47], %69 {strides = array<i32>} : memref<1x128xf32, #tpu.memory_space<vmem>>, vector<1x128xf32>,
      %cst_48 = arith.constant 0.000000e+00 : f32
      %71 = vector.broadcast %cst_48 : f32 to vector<1x128xf32>
      %c0_49 = arith.constant 0 : index
      %c0_50 = arith.constant 0 : index
      %72 = vector.load %arg11[%c0_49, %c0_50] : memref<1x128xf32, #tpu.memory_space<vmem>>, vector<1x128xf32>
      tpu.vector_store %arg11[%c0_49, %c0_50], %71 {strides = array<i32>} : memref<1x128xf32, #tpu.memory_space<vmem>>, vector<1x128xf32>,
    } else {
    }
    %c0 = arith.constant 0 : index
    %c0_1 = arith.constant 0 : index
    %3 = vector.load %arg3[%c0, %c0_1] : memref<8x128xf32, #tpu.memory_space<vmem>>, vector<8x128xf32>
    %c0_2 = arith.constant 0 : index
    %c0_3 = arith.constant 0 : index
    %4 = vector.load %arg4[%c0_2, %c0_3] : memref<8x128xf32, #tpu.memory_space<vmem>>, vector<8x128xf32>
    %c0_4 = arith.constant 0 : index
    %c0_5 = arith.constant 0 : index
    %5 = vector.load %arg5[%c0_4, %c0_5] : memref<8x128xf32, #tpu.memory_space<vmem>>, vector<8x128xf32>
    %c0_6 = arith.constant 0 : index
    %c0_7 = arith.constant 0 : index
    %6 = vector.load %arg6[%c0_6, %c0_7] : memref<8x128xf32, #tpu.memory_space<vmem>>, vector<8x128xf32>
    %7 = tpu.iota {dimensions = array<i32: 0>} : vector<8x128xi32>
    %c8_i32 = arith.constant 8 : i32
    %8 = arith.muli %arg0, %c8_i32 : i32
    %9 = vector.broadcast %8 : i32 to vector<8x128xi32>
    %10 = arith.addi %7, %9 : vector<8x128xi32>
    %11 = tpu.iota {dimensions = array<i32: 1>} : vector<8x128xi32>
    %c128_i32 = arith.constant 128 : i32
    %12 = vector.broadcast %c128_i32 : i32 to vector<8x128xi32>
    %13 = arith.muli %10, %12 : vector<8x128xi32>
    %14 = arith.addi %13, %11 : vector<8x128xi32>
    %c0_8 = arith.constant 0 : index
    %15 = memref.load %arg1[%c0_8] : memref<1xi32, #tpu.memory_space<smem>>
    %16 = vector.broadcast %15 : i32 to vector<8x128xi32>
    %17 = arith.cmpi slt, %14, %16 : vector<8x128xi32>
    %cst = arith.constant 0.000000e+00 : f32
    %18 = vector.broadcast %cst : f32 to vector<8x128xf32>
    %19 = arith.maximumf %3, %18 : vector<8x128xf32>
    %20 = arith.mulf %3, %4 : vector<8x128xf32>
    %21 = arith.subf %19, %20 : vector<8x128xf32>
    %22 = math.absf %3 : vector<8x128xf32>
    %cst_9 = arith.constant 0.000000e+00 : f32
    %23 = vector.broadcast %cst_9 : f32 to vector<8x128xf32>
    %24 = arith.subf %23, %22 : vector<8x128xf32>
    %25 = math.exp %24 : vector<8x128xf32>
    %cst_10 = arith.constant 1.000000e+00 : f32
    %26 = vector.broadcast %cst_10 : f32 to vector<8x128xf32>
    %27 = arith.addf %26, %25 : vector<8x128xf32>
    %28 = math.log %27 : vector<8x128xf32>
    %29 = arith.addf %21, %28 : vector<8x128xf32>
    %cst_11 = arith.constant 0.000000e+00 : f32
    %30 = vector.broadcast %cst_11 : f32 to vector<8x128xf32>
    %31 = arith.cmpf oeq, %4, %30 : vector<8x128xf32>
    %32 = arith.andi %17, %31 : vector<8x128xi1>
    %c0_12 = arith.constant 0 : index
    %c0_13 = arith.constant 0 : index
    %33 = vector.load %arg8[%c0_12, %c0_13] : memref<1x128xf32, #tpu.memory_space<vmem>>, vector<1x128xf32>
    %cst_14 = arith.constant 0.000000e+00 : f32
    %34 = vector.broadcast %cst_14 : f32 to vector<8x128xf32>
    %35 = arith.select %17, %29, %34 : vector<8x128xi1>, vector<8x128xf32>
    %cst_15 = arith.constant dense<0.000000e+00> : vector<128xf32>
    %36 = vector.multi_reduction <add>, %35, %cst_15 [0] : vector<8x128xf32> to vector<128xf32>
    %37 = vector.shape_cast %36 : vector<128xf32> to vector<1x128xf32>
    %38 = arith.addf %33, %37 : vector<1x128xf32>
    %c0_16 = arith.constant 0 : index
    %c0_17 = arith.constant 0 : index
    %39 = vector.load %arg8[%c0_16, %c0_17] : memref<1x128xf32, #tpu.memory_space<vmem>>, vector<1x128xf32>
    tpu.vector_store %arg8[%c0_16, %c0_17], %38 {strides = array<i32>} : memref<1x128xf32, #tpu.memory_space<vmem>>, vector<1x128xf32>,
    %c0_18 = arith.constant 0 : index
    %c0_19 = arith.constant 0 : index
    %40 = vector.load %arg11[%c0_18, %c0_19] : memref<1x128xf32, #tpu.memory_space<vmem>>, vector<1x128xf32>
    %cst_20 = arith.constant 1.000000e+00 : f32
    %cst_21 = arith.constant 0.000000e+00 : f32
    %41 = vector.broadcast %cst_20 : f32 to vector<8x128xf32>
    %42 = vector.broadcast %cst_21 : f32 to vector<8x128xf32>
    %43 = arith.select %32, %41, %42 : vector<8x128xi1>, vector<8x128xf32>
    %cst_22 = arith.constant dense<0.000000e+00> : vector<128xf32>
    %44 = vector.multi_reduction <add>, %43, %cst_22 [0] : vector<8x128xf32> to vector<128xf32>
    %45 = vector.shape_cast %44 : vector<128xf32> to vector<1x128xf32>
    %46 = arith.addf %40, %45 : vector<1x128xf32>
    %c0_23 = arith.constant 0 : index
    %c0_24 = arith.constant 0 : index
    %47 = vector.load %arg11[%c0_23, %c0_24] : memref<1x128xf32, #tpu.memory_space<vmem>>, vector<1x128xf32>
    tpu.vector_store %arg11[%c0_23, %c0_24], %46 {strides = array<i32>} : memref<1x128xf32, #tpu.memory_space<vmem>>, vector<1x128xf32>,
    %c0_25 = arith.constant 0 : index
    %c0_26 = arith.constant 0 : index
    %48 = vector.load %arg9[%c0_25, %c0_26] : memref<1x128xf32, #tpu.memory_space<vmem>>, vector<1x128xf32>
    %cst_27 = arith.constant 0.000000e+00 : f32
    %49 = vector.broadcast %cst_27 : f32 to vector<8x128xf32>
    %50 = arith.select %32, %5, %49 : vector<8x128xi1>, vector<8x128xf32>
    %cst_28 = arith.constant dense<0.000000e+00> : vector<128xf32>
    %51 = vector.multi_reduction <add>, %50, %cst_28 [0] : vector<8x128xf32> to vector<128xf32>
    %52 = vector.shape_cast %51 : vector<128xf32> to vector<1x128xf32>
    %53 = arith.addf %48, %52 : vector<1x128xf32>
    %c0_29 = arith.constant 0 : index
    %c0_30 = arith.constant 0 : index
    %54 = vector.load %arg9[%c0_29, %c0_30] : memref<1x128xf32, #tpu.memory_space<vmem>>, vector<1x128xf32>
    tpu.vector_store %arg9[%c0_29, %c0_30], %53 {strides = array<i32>} : memref<1x128xf32, #tpu.memory_space<vmem>>, vector<1x128xf32>,
    %c0_31 = arith.constant 0 : index
    %c0_32 = arith.constant 0 : index
    %55 = vector.load %arg10[%c0_31, %c0_32] : memref<1x128xf32, #tpu.memory_space<vmem>>, vector<1x128xf32>
    %cst_33 = arith.constant 0.000000e+00 : f32
    %56 = vector.broadcast %cst_33 : f32 to vector<8x128xf32>
    %57 = arith.select %32, %6, %56 : vector<8x128xi1>, vector<8x128xf32>
    %cst_34 = arith.constant dense<0.000000e+00> : vector<128xf32>
    %58 = vector.multi_reduction <add>, %57, %cst_34 [0] : vector<8x128xf32> to vector<128xf32>
    %59 = vector.shape_cast %58 : vector<128xf32> to vector<1x128xf32>
    %60 = arith.addf %55, %59 : vector<1x128xf32>
    %c0_35 = arith.constant 0 : index
    %c0_36 = arith.constant 0 : index
    %61 = vector.load %arg10[%c0_35, %c0_36] : memref<1x128xf32, #tpu.memory_space<vmem>>, vector<1x128xf32>
    tpu.vector_store %arg10[%c0_35, %c0_36], %60 {strides = array<i32>} : memref<1x128xf32, #tpu.memory_space<vmem>>, vector<1x128xf32>,
    %c0_i32_37 = arith.constant 0 : i32
    %62 = arith.cmpi eq, %arg0, %c0_i32_37 : i32
    %63 = arith.extui %62 : i1 to i32
    %c0_i32_38 = arith.constant 0 : i32
    %64 = arith.cmpi ne, %63, %c0_i32_38 : i32
    scf.if %64 {
      %c0_39 = arith.constant 0 : index
      %65 = memref.load %arg2[%c0_39] : memref<3xf32, #tpu.memory_space<smem>>
      %c1 = arith.constant 1 : index
      %66 = memref.load %arg2[%c1] : memref<3xf32, #tpu.memory_space<smem>>
      %c2 = arith.constant 2 : index
      %67 = memref.load %arg2[%c2] : memref<3xf32, #tpu.memory_space<smem>>
      %c0_40 = arith.constant 0 : index
      %c0_41 = arith.constant 0 : index
      %68 = vector.load %arg8[%c0_40, %c0_41] : memref<1x128xf32, #tpu.memory_space<vmem>>, vector<1x128xf32>
      %69 = vector.shape_cast %68 : vector<1x128xf32> to vector<1x1x128xf32>
      %cst_42 = arith.constant dense<0.000000e+00> : vector<1xf32>
      %70 = vector.multi_reduction <add>, %69, %cst_42 [1, 2] : vector<1x1x128xf32> to vector<1xf32>
      %71 = vector.shape_cast %70 : vector<1xf32> to vector<1x1x1xf32>
      %72 = vector.extract %71[0, 0, 0] : f32 from vector<1x1x1xf32>
      %73 = vector.broadcast %72 : f32 to vector<1x1xf32>
      %74 = vector.broadcast %67 : f32 to vector<1x1xf32>
      %75 = arith.divf %73, %74 : vector<1x1xf32>
      %c0_43 = arith.constant 0 : index
      %c0_44 = arith.constant 0 : index
      %76 = vector.load %arg11[%c0_43, %c0_44] : memref<1x128xf32, #tpu.memory_space<vmem>>, vector<1x128xf32>
      %77 = vector.shape_cast %76 : vector<1x128xf32> to vector<1x1x128xf32>
      %cst_45 = arith.constant dense<0.000000e+00> : vector<1xf32>
      %78 = vector.multi_reduction <add>, %77, %cst_45 [1, 2] : vector<1x1x128xf32> to vector<1xf32>
      %79 = vector.shape_cast %78 : vector<1xf32> to vector<1x1x1xf32>
      %80 = vector.extract %79[0, 0, 0] : f32 from vector<1x1x1xf32>
      %81 = vector.broadcast %80 : f32 to vector<1x1xf32>
      %c0_46 = arith.constant 0 : index
      %c0_47 = arith.constant 0 : index
      %82 = vector.load %arg9[%c0_46, %c0_47] : memref<1x128xf32, #tpu.memory_space<vmem>>, vector<1x128xf32>
      %83 = vector.shape_cast %82 : vector<1x128xf32> to vector<1x1x128xf32>
      %cst_48 = arith.constant dense<0.000000e+00> : vector<1xf32>
      %84 = vector.multi_reduction <add>, %83, %cst_48 [1, 2] : vector<1x1x128xf32> to vector<1xf32>
      %85 = vector.shape_cast %84 : vector<1xf32> to vector<1x1x1xf32>
      %86 = vector.extract %85[0, 0, 0] : f32 from vector<1x1x1xf32>
      %87 = vector.broadcast %86 : f32 to vector<1x1xf32>
      %c0_49 = arith.constant 0 : index
      %c0_50 = arith.constant 0 : index
      %88 = vector.load %arg10[%c0_49, %c0_50] : memref<1x128xf32, #tpu.memory_space<vmem>>, vector<1x128xf32>
      %89 = vector.shape_cast %88 : vector<1x128xf32> to vector<1x1x128xf32>
      %cst_51 = arith.constant dense<0.000000e+00> : vector<1xf32>
      %90 = vector.multi_reduction <add>, %89, %cst_51 [1, 2] : vector<1x1x128xf32> to vector<1xf32>
      %91 = vector.shape_cast %90 : vector<1xf32> to vector<1x1x1xf32>
      %92 = vector.extract %91[0, 0, 0] : f32 from vector<1x1x1xf32>
      %93 = vector.broadcast %92 : f32 to vector<1x1xf32>
      %cst_52 = arith.constant 1.000000e+00 : f32
      %94 = vector.broadcast %cst_52 : f32 to vector<1x1xf32>
      %95 = arith.maximumf %81, %94 : vector<1x1xf32>
      %cst_53 = arith.constant 0.000000e+00 : f32
      %96 = vector.broadcast %cst_53 : f32 to vector<1x1xf32>
      %97 = arith.cmpf ogt, %81, %96 : vector<1x1xf32>
      %98 = arith.addf %87, %93 : vector<1x1xf32>
      %99 = vector.broadcast %65 : f32 to vector<1x1xf32>
      %100 = arith.mulf %99, %98 : vector<1x1xf32>
      %101 = arith.divf %100, %95 : vector<1x1xf32>
      %cst_54 = arith.constant 0.000000e+00 : f32
      %102 = vector.broadcast %cst_54 : f32 to vector<1x1xf32>
      %103 = arith.select %97, %101, %102 : vector<1x1xi1>, vector<1x1xf32>
      %104 = arith.addf %75, %103 : vector<1x1xf32>
      %105 = vector.broadcast %66 : f32 to vector<1x1xf32>
      %106 = arith.addf %104, %105 : vector<1x1xf32>
      %107 = tpu.iota {dimensions = array<i32: 1>} : vector<1x128xi32>
      %c0_i32_55 = arith.constant 0 : i32
      %108 = vector.broadcast %c0_i32_55 : i32 to vector<1x128xi32>
      %109 = arith.cmpi eq, %107, %108 : vector<1x128xi32>
      %c1_i32 = arith.constant 1 : i32
      %110 = vector.broadcast %c1_i32 : i32 to vector<1x128xi32>
      %111 = arith.cmpi eq, %107, %110 : vector<1x128xi32>
      %c2_i32 = arith.constant 2 : i32
      %112 = vector.broadcast %c2_i32 : i32 to vector<1x128xi32>
      %113 = arith.cmpi eq, %107, %112 : vector<1x128xi32>
      %c3_i32 = arith.constant 3 : i32
      %114 = vector.broadcast %c3_i32 : i32 to vector<1x128xi32>
      %115 = arith.cmpi eq, %107, %114 : vector<1x128xi32>
      %cst_56 = arith.constant 0.000000e+00 : f32
      %116 = vector.broadcast %66 : f32 to vector<1x128xf32>
      %117 = vector.broadcast %cst_56 : f32 to vector<1x128xf32>
      %118 = arith.select %115, %116, %117 : vector<1x128xi1>, vector<1x128xf32>
      %119 = vector.shape_cast %103 : vector<1x1xf32> to vector<1x1xf32>
      %120 = vector.broadcast %119 : vector<1x1xf32> to vector<1x128xf32>
      %121 = arith.select %113, %120, %118 : vector<1x128xi1>, vector<1x128xf32>
      %122 = vector.shape_cast %75 : vector<1x1xf32> to vector<1x1xf32>
      %123 = vector.broadcast %122 : vector<1x1xf32> to vector<1x128xf32>
      %124 = arith.select %111, %123, %121 : vector<1x128xi1>, vector<1x128xf32>
      %125 = vector.shape_cast %106 : vector<1x1xf32> to vector<1x1xf32>
      %126 = vector.broadcast %125 : vector<1x1xf32> to vector<1x128xf32>
      %127 = arith.select %109, %126, %124 : vector<1x128xi1>, vector<1x128xf32>
      %c0_57 = arith.constant 0 : index
      %c0_58 = arith.constant 0 : index
      %128 = vector.load %arg7[%c0_57, %c0_58] : memref<1x128xf32, #tpu.memory_space<vmem>>, vector<1x128xf32>
      tpu.vector_store %arg7[%c0_57, %c0_58], %127 {strides = array<i32>} : memref<1x128xf32, #tpu.memory_space<vmem>>, vector<1x128xf32>,
    } else {
    }
    return
  }
  func.func @transform_0(%arg0: i32) -> i32 {
    %c0_i32 = arith.constant 0 : i32
    %c0_i32_0 = arith.constant 0 : i32
    return %c0_i32 : i32
  }
  func.func @transform_1(%arg0: i32) -> i32 {
    %c0_i32 = arith.constant 0 : i32
    %c0_i32_0 = arith.constant 0 : i32
    return %c0_i32 : i32
  }
  func.func @transform_2(%arg0: i32) -> (i32, i32) {
    %c0_i32 = arith.constant 0 : i32
    %c0_i32_0 = arith.constant 0 : i32
    return %arg0, %c0_i32 : i32, i32
  }
  func.func @transform_3(%arg0: i32) -> (i32, i32) {
    %c0_i32 = arith.constant 0 : i32
    %c0_i32_0 = arith.constant 0 : i32
    return %arg0, %c0_i32 : i32, i32
  }
  func.func @transform_4(%arg0: i32) -> (i32, i32) {
    %c0_i32 = arith.constant 0 : i32
    %c0_i32_0 = arith.constant 0 : i32
    return %arg0, %c0_i32 : i32, i32
  }
  func.func @transform_5(%arg0: i32) -> (i32, i32) {
    %c0_i32 = arith.constant 0 : i32
    %c0_i32_0 = arith.constant 0 : i32
    return %arg0, %c0_i32 : i32, i32
  }
  func.func @transform_6(%arg0: i32) -> (i32, i32) {
    %c0_i32 = arith.constant 0 : i32
    %c0_i32_0 = arith.constant 0 : i32
    %c0_i32_1 = arith.constant 0 : i32
    return %c0_i32, %c0_i32_0 : i32, i32
  }
}

</mosaic_0001>

<llo_original>
// kernel: tpu_custom_call.1
$region0: #{tpu_custom_call.1}
  #allocation0 [shape = 'u32[]', space=smem, size = 0x4, offset = 0x4, fixed_abs, tag = 'smem constant byte address 0x4 - core index']
  #allocation1 [shape = 'u32[144,128]{1,0:T(1,128)}', space=vmem, size = 0x12000, scoped, tag = 'internal scratch']
  #allocation2 [shape = 'f32[1,128]{1,0:T(1,128)}', space=vmem, size = 0x200, scoped, tag = 'scratch operand']
  #allocation3 [shape = 'f32[1,128]{1,0:T(1,128)}', space=vmem, size = 0x200, scoped, tag = 'scratch operand']
  #allocation4 [shape = 'f32[1,128]{1,0:T(1,128)}', space=vmem, size = 0x200, scoped, tag = 'scratch operand']
  #allocation5 [shape = 'f32[1,128]{1,0:T(1,128)}', space=vmem, size = 0x200, scoped, tag = 'scratch operand']
  #allocation6 [shape = 's32[1]{0:T(128)S(6)}', space=smem, size = 0x200, scoped, tag = 'scoped memory for tpu_custom_call.1']
  %s0 = inlined_call_operand.<no memory space> [shape: s32[1], index: 0, kind: input, shape index: {}]
  %s1 = inlined_call_operand.vmem [shape: f32[3], index: 1, kind: input, shape index: {}]
  %s2 = inlined_call_operand.hbm [shape: f32[8,128], index: 2, kind: input, shape index: {}]
  %s3 = inlined_call_operand.hbm [shape: f32[8,128], index: 3, kind: input, shape index: {}]
  %s4 = inlined_call_operand.hbm [shape: f32[8,128], index: 4, kind: input, shape index: {}]
  %s5 = inlined_call_operand.vmem [shape: f32[8,128], index: 5, kind: input, shape index: {}]
  %s6 = inlined_call_operand.hbm [shape: f32[1,128], index: 6, kind: output, shape index: {}]
  %s7 = sld [smem:[#allocation0]]
  $region58: #{tpu_custom_call.1} parent=0
    _
  %s9 = ssub.s32 1, %s7
  %s10 = scalar_select 0, %s9, %s7
  %11 = sst [smem:[#allocation6]] %s0
  $region1: #{tpu_custom_call.1} parent=0
    #allocation7 [shape = 'u8[512]{0}', space=smem, size = 0x200, scoped, tag = 'input window, operand 1, single buffered']
    #allocation8 [shape = 's32[1]{0}', space=sflag, size = 0x4, scoped, tag = 'scoped memory for tpu_custom_call.1']
    #allocation9 [shape = 's32[1]{0}', space=sflag, size = 0x4, scoped, tag = 'scoped memory for tpu_custom_call.1']
    #allocation10 [shape = 's32[1]{0}', space=sflag, size = 0x4, scoped, tag = 'scoped memory for tpu_custom_call.1']
    #allocation11 [shape = 'u8[4096]{0}', space=vmem, size = 0x1000, scoped, tag = 'input window, operand 2, single buffered']
    #allocation12 [shape = 'u8[4096]{0}', space=vmem, size = 0x1000, scoped, tag = 'input window, operand 3, single buffered']
    #allocation13 [shape = 's32[1]{0}', space=sflag, size = 0x4, scoped, tag = 'scoped memory for tpu_custom_call.1']
    #allocation14 [shape = 'u8[4096]{0}', space=vmem, size = 0x1000, scoped, tag = 'input window, operand 4, single buffered']
    #allocation15 [shape = 'u8[512]{0}', space=vmem, size = 0x400, scoped, tag = 'output window, operand 0, single buffered']
    %12 = vsyncpa [#allocation10], 0
    %13 = vsyncpa [#allocation8], 0
    %14 = vsyncpa [#allocation13], 0
    %15 = vsyncpa [#allocation9], 0
    // Predicated region
    $region2: #{tpu_custom_call.1} parent=1 // pred_check
      _
    $region3: #{tpu_custom_call.1} parent=1 // pred_check_branch
      %17 = sbr.rel (0) target = $region5
    $region4: #{tpu_custom_call.1} parent=1 // pred_region
      _
    $region5: #{tpu_custom_call.1} parent=1 // pred_fallthru
      _
    // Predicated region
    $region6: #{tpu_custom_call.1} parent=1 // pred_check
      _
    $region7: #{tpu_custom_call.1} parent=1 // pred_check_branch
      %19 = sbr.rel (0) target = $region9
    $region8: #{tpu_custom_call.1} parent=1 // pred_region
      %s21 = ssub.s32 16, 16
      %22 = vsyncadd [#allocation10], %s21
      %s24 = sshll.u32 %s1, 4
      %s25 = int_to_ptr.vmem [resolvable:$true] %s24
      %27 = dma.vmem_to_smem %s25, 16, [#allocation7], [#allocation10]
    $region9: #{tpu_custom_call.1} parent=1 // pred_fallthru
      _
    // Predicated region
    $region10: #{tpu_custom_call.1} parent=1 // pred_check
      _
    $region11: #{tpu_custom_call.1} parent=1 // pred_check_branch
      %29 = sbr.rel (0) target = $region13
    $region12: #{tpu_custom_call.1} parent=1 // pred_region
      %s31 = ssub.s32 128, 128
      %32 = vsyncadd [#allocation8], %s31
      %s34 = sshll.u32 [#allocation11], 4
      %s35 = int_to_ptr.vmem [resolvable:$true] %s34
      %37 = dma.hbm_to_vmem [thread:$0]  %s2, 128, %s35, [#allocation8]
    $region13: #{tpu_custom_call.1} parent=1 // pred_fallthru
      _
    // Predicated region
    $region14: #{tpu_custom_call.1} parent=1 // pred_check
      _
    $region15: #{tpu_custom_call.1} parent=1 // pred_check_branch
      %39 = sbr.rel (0) target = $region17
    $region16: #{tpu_custom_call.1} parent=1 // pred_region
      %s41 = ssub.s32 128, 128
      %42 = vsyncadd [#allocation13], %s41
      %s44 = sshll.u32 [#allocation12], 4
      %s45 = int_to_ptr.vmem [resolvable:$true] %s44
      %47 = dma.hbm_to_vmem [thread:$0]  %s3, 128, %s45, [#allocation13]
    $region17: #{tpu_custom_call.1} parent=1 // pred_fallthru
      _
    // Predicated region
    $region18: #{tpu_custom_call.1} parent=1 // pred_check
      _
    $region19: #{tpu_custom_call.1} parent=1 // pred_check_branch
      %49 = sbr.rel (0) target = $region21
    $region20: #{tpu_custom_call.1} parent=1 // pred_region
      %s51 = ssub.s32 128, 128
      %52 = vsyncadd [#allocation13], %s51
      %s54 = sshll.u32 [#allocation14], 4
      %s55 = int_to_ptr.vmem [resolvable:$true] %s54
      %57 = dma.hbm_to_vmem [thread:$0]  %s4, 128, %s55, [#allocation13]
    $region21: #{tpu_custom_call.1} parent=1 // pred_fallthru
      _
    // Predicated region
    $region22: #{tpu_custom_call.1} parent=1 // pred_check
      _
    $region23: #{tpu_custom_call.1} parent=1 // pred_check_branch
      %59 = sbr.rel (0) target = $region25
    $region24: #{tpu_custom_call.1} parent=1 // pred_region
      _
    $region25: #{tpu_custom_call.1} parent=1 // pred_fallthru
      _
    // Predicated region
    $region26: #{tpu_custom_call.1} parent=1 // pred_check
      _
    $region27: #{tpu_custom_call.1} parent=1 // pred_check_branch
      %61 = sbr.rel (0) target = $region29
    $region28: #{tpu_custom_call.1} parent=1 // pred_region
      %62 = dma.done [#allocation10], 16
    $region29: #{tpu_custom_call.1} parent=1 // pred_fallthru
      _
    // Predicated region
    $region30: #{tpu_custom_call.1} parent=1 // pred_check
      _
    $region31: #{tpu_custom_call.1} parent=1 // pred_check_branch
      %64 = sbr.rel (0) target = $region33
    $region32: #{tpu_custom_call.1} parent=1 // pred_region
      %65 = dma.done [#allocation8], 128
    $region33: #{tpu_custom_call.1} parent=1 // pred_fallthru
      _
    // Predicated region
    $region34: #{tpu_custom_call.1} parent=1 // pred_check
      _
    $region35: #{tpu_custom_call.1} parent=1 // pred_check_branch
      %67 = sbr.rel (0) target = $region37
    $region36: #{tpu_custom_call.1} parent=1 // pred_region
      %68 = dma.done [#allocation13], 128
    $region37: #{tpu_custom_call.1} parent=1 // pred_fallthru
      _
    // Predicated region
    $region38: #{tpu_custom_call.1} parent=1 // pred_check
      _
    $region39: #{tpu_custom_call.1} parent=1 // pred_check_branch
      %70 = sbr.rel (0) target = $region41
    $region40: #{tpu_custom_call.1} parent=1 // pred_region
      %71 = dma.done [#allocation13], 128
    $region41: #{tpu_custom_call.1} parent=1 // pred_fallthru
      _
    %72 = sfence
    %p73 = scmp.eq.s32.totalorder 0, 0
    // Predicated region
    $region42: #{tpu_custom_call.1} parent=1 // pred_check
      %p74 = pneg %p73
    $region43: #{tpu_custom_call.1} parent=1 // pred_check_branch
      %76 = sbr.rel (%p74) target = $region45
    $region44: #{tpu_custom_call.1} parent=1 // pred_region
      %77 = vst [vmem:[#allocation2] sm:$0x1] 0.0
      %78 = vst [vmem:[#allocation3] sm:$0x1] 0.0
      %79 = vst [vmem:[#allocation4] sm:$0x1] 0.0
      %80 = vst [vmem:[#allocation5] sm:$0x1] 0.0
    $region45: #{tpu_custom_call.1} parent=1 // pred_fallthru
      _
    %v81 = vld [vmem:[#allocation11] sm:$0xff]
    %v82 = vld [vmem:[#allocation12] sm:$0xff]
    %v83 = vld [vmem:[#allocation14] sm:$0xff]
    %v84 = vld [vmem:[%s5] sm:$0xff]
    %v85 = vlaneseq
    %v86 = vshrl.u32 %v85, 7
    %s87 = smul.u32 0, 8
    %v88 = vstv %s87
    %v89 = vadd.s32 %v86, %v88
    %v90 = vlaneseq
    %v91 = vand.u32 %v90, 127
    %v92 = vmul.u32 %v89, 128
    %v93 = vadd.s32 %v92, %v91
    %s94 = sld [smem:[#allocation6]]
    %v95 = vstv %s94
    %vm96 = vcmp.lt.s32.totalorder %v93, %v95
    %v97 = vmax.f32 %v81, 0.0
    %v98 = vmul.f32 %v81, %v82
    %v99 = vsub.f32 %v97, %v98
    %v100 = vand.u32 2147483647, %v81
    %v101 = vsub.f32 0.0, %v100
    %v102 = vmul.f32 %v101, 1.442695
    %v103 = vpow.pop %v102
    %v104 = vadd.f32 %v103, 1.0
    %v105 = vlog2.pop %v104
    %v106 = vmul.f32 %v105, 0.6931472
    %v107 = vadd.f32 %v99, %v106
    %vm108 = vcmp.eq.f32.partialorder %v82, 0.0
    %vm109 = vmand %vm96, %vm108
    %v110 = vld [vmem:[#allocation2] sm:$0x1]
    %v111 = vsel %vm96, %v107, 0.0
    %v112 = vrot.slane %v111, 4
    %v113 = vadd.f32 %v111, %v112
    %v114 = vrot.slane %v113, 2
    %v115 = vadd.f32 %v113, %v114
    %v116 = vrot.slane %v115, 1
    %v117 = vadd.f32 %v115, %v116
    %v118 = vadd.f32 %v110, %v117
    %119 = vst [vmem:[#allocation2] sm:$0x1] %v118
    %v120 = vld [vmem:[#allocation5] sm:$0x1]
    %v121 = vsel %vm109, 1.0, 0.0
    %v122 = vrot.slane %v121, 4
    %v123 = vadd.f32 %v121, %v122
    %v124 = vrot.slane %v123, 2
    %v125 = vadd.f32 %v123, %v124
    %v126 = vrot.slane %v125, 1
    %v127 = vadd.f32 %v125, %v126
    %v128 = vadd.f32 %v120, %v127
    %129 = vst [vmem:[#allocation5] sm:$0x1] %v128
    %v130 = vld [vmem:[#allocation3] sm:$0x1]
    %v131 = vsel %vm109, %v83, 0.0
    %v132 = vrot.slane %v131, 4
    %v133 = vadd.f32 %v131, %v132
    %v134 = vrot.slane %v133, 2
    %v135 = vadd.f32 %v133, %v134
    %v136 = vrot.slane %v135, 1
    %v137 = vadd.f32 %v135, %v136
    %v138 = vadd.f32 %v130, %v137
    %139 = vst [vmem:[#allocation3] sm:$0x1] %v138
    %v140 = vld [vmem:[#allocation4] sm:$0x1]
    %v141 = vsel %vm109, %v84, 0.0
    %v142 = vrot.slane %v141, 4
    %v143 = vadd.f32 %v141, %v142
    %v144 = vrot.slane %v143, 2
    %v145 = vadd.f32 %v143, %v144
    %v146 = vrot.slane %v145, 1
    %v147 = vadd.f32 %v145, %v146
    %v148 = vadd.f32 %v140, %v147
    %149 = vst [vmem:[#allocation4] sm:$0x1] %v148
    // Predicated region
    $region46: #{tpu_custom_call.1} parent=1 // pred_check
      %p150 = pneg %p73
    $region47: #{tpu_custom_call.1} parent=1 // pred_check_branch
      %152 = sbr.rel (%p150) target = $region49
    $region48: #{tpu_custom_call.1} parent=1 // pred_region
      %s153 = sld [smem:[#allocation7]]
      %s154 = sld [smem:[#allocation7 + $0x1]]
      %s155 = sld [smem:[#allocation7 + $0x2]]
      %v156 = vld [vmem:[#allocation2] sm:$0x1]
      %vm157 = vcmask 1040384
      %v158 = vsel %vm157, %v156, 0.0
      %159 = vadd.xlane.f32.xlu0 %v158
      %v160 = vpop.xlane.xlu0 %159
      %v161 = vrot.slane %v160, 4
      %v162 = vadd.f32 %v160, %v161
      %v163 = vrot.slane %v162, 2
      %v164 = vadd.f32 %v162, %v163
      %v165 = vrot.slane %v164, 1
      %v166 = vadd.f32 %v164, %v165
      %s167 = vtos %v166
      %v168 = vstv %s167
      %v169 = vstv %s155
      %v170 = vrcp.pop %v169
      %v171 = vmul.f32 %v168, %v170
      %v172 = vld [vmem:[#allocation5] sm:$0x1]
      %v173 = vsel %vm157, %v172, 0.0
      %174 = vadd.xlane.f32.xlu0 %v173
      %v175 = vpop.xlane.xlu0 %174
      %v176 = vrot.slane %v175, 4
      %v177 = vadd.f32 %v175, %v176
      %v178 = vrot.slane %v177, 2
      %v179 = vadd.f32 %v177, %v178
      %v180 = vrot.slane %v179, 1
      %v181 = vadd.f32 %v179, %v180
      %s182 = vtos %v181
      %v183 = vstv %s182
      %v184 = vld [vmem:[#allocation3] sm:$0x1]
      %v185 = vsel %vm157, %v184, 0.0
      %186 = vadd.xlane.f32.xlu0 %v185
      %v187 = vpop.xlane.xlu0 %186
      %v188 = vrot.slane %v187, 4
      %v189 = vadd.f32 %v187, %v188
      %v190 = vrot.slane %v189, 2
      %v191 = vadd.f32 %v189, %v190
      %v192 = vrot.slane %v191, 1
      %v193 = vadd.f32 %v191, %v192
      %s194 = vtos %v193
      %v195 = vstv %s194
      %v196 = vld [vmem:[#allocation4] sm:$0x1]
      %v197 = vsel %vm157, %v196, 0.0
      %198 = vadd.xlane.f32.xlu0 %v197
      %v199 = vpop.xlane.xlu0 %198
      %v200 = vrot.slane %v199, 4
      %v201 = vadd.f32 %v199, %v200
      %v202 = vrot.slane %v201, 2
      %v203 = vadd.f32 %v201, %v202
      %v204 = vrot.slane %v203, 1
      %v205 = vadd.f32 %v203, %v204
      %s206 = vtos %v205
      %v207 = vstv %s206
      %v208 = vmax.f32 %v183, 1.0
      %vm209 = vcmp.gt.f32.partialorder %v183, 0.0
      %v210 = vadd.f32 %v195, %v207
      %v211 = vstv %s153
      %v212 = vmul.f32 %v211, %v210
      %v213 = vrcp.pop %v208
      %v214 = vmul.f32 %v212, %v213
      %v215 = vsel %vm209, %v214, 0.0
      %v216 = vadd.f32 %v171, %v215
      %v217 = vstv %s154
      %v218 = vadd.f32 %v216, %v217
      %vm219 = vcmp.eq.s32.totalorder %v91, 0
      %vm220 = vcmp.eq.s32.totalorder %v91, 1
      %vm221 = vcmp.eq.s32.totalorder %v91, 2
      %vm222 = vcmp.eq.s32.totalorder %v91, 3
      %v223 = vsel %vm222, %v217, 0.0
      %v224 = vsel %vm221, %v215, %v223
      %v225 = vsel %vm220, %v171, %v224
      %v226 = vsel %vm219, %v218, %v225
      %227 = vst [vmem:[#allocation15] sm:$0x1] %v226
    $region49: #{tpu_custom_call.1} parent=1 // pred_fallthru
      _
    // Predicated region
    $region50: #{tpu_custom_call.1} parent=1 // pred_check
      _
    $region51: #{tpu_custom_call.1} parent=1 // pred_check_branch
      %229 = sbr.rel (0) target = $region53
    $region52: #{tpu_custom_call.1} parent=1 // pred_region
      %s231 = ssub.s32 16, 16
      %232 = vsyncadd [#allocation9], %s231
      %s234 = sshll.u32 [#allocation15], 4
      %s235 = int_to_ptr.vmem [resolvable:$true] %s234
      %237 = dma.vmem_to_hbm [thread:$0]  %s235, 16, %s6, [#allocation9]
    $region53: #{tpu_custom_call.1} parent=1 // pred_fallthru
      _
    // Predicated region
    $region54: #{tpu_custom_call.1} parent=1 // pred_check
      _
    $region55: #{tpu_custom_call.1} parent=1 // pred_check_branch
      %239 = sbr.rel (0) target = $region57
    $region56: #{tpu_custom_call.1} parent=1 // pred_region
      %240 = dma.done [#allocation9], 16
    $region57: #{tpu_custom_call.1} parent=1 // pred_fallthru
      _
    %241 = vsyncpa [#allocation8], 1
    %242 = vsyncpa [#allocation13], 1
    %243 = vsyncpa [#allocation9], 1
    %244 = vsyncpa [#allocation10], 1

</llo_original>
